<compile_context>
chip_gen: v5e
topology: v5e:2x2
jax: 0.10.0
libtpu: 0.0.40
codegen_flags: <defaults>
</compile_context>

<pallas_src>
import functools
import math

import jax
import jax.numpy as jnp
from jax.experimental import pallas as pl
from jax.experimental.pallas import tpu as pltpu


def _round_up(x, m):
    return ((x + m - 1) // m) * m


# ---------------------------------------------------------------------------
# Kernel: one batch tile (natural-layout I/O, batch-on-lanes compute).
#   x_ref    : [TILE_B, state_dim]   (compute dtype)
#   wK_ref   : [out_k, in_k]         (PyTorch-native layout)
#   bK_ref   : [out_k, 1]            (f32)
#   mean_ref : [TILE_B, action_dim]  (f32)
# ---------------------------------------------------------------------------
def _policy_kernel(a_bound_ref, x_ref, w0_ref, b0_ref, w1_ref, b1_ref,
                   w2_ref, b2_ref, mean_ref, *, act_dtype):
    a_bound = a_bound_ref[0]                          # SMEM scalar

    # Natural-layout tile -> batch-on-lanes.  Transpose in f32 (robust
    # lowering); the XLU slot is otherwise idle in this kernel.
    xT = x_ref[...].astype(jnp.float32).T             # [state_dim, TILE_B]

    def layer(w_ref, b_ref, h):
        z = jnp.dot(w_ref[...], h.astype(w_ref.dtype),
                    preferred_element_type=jnp.float32) + b_ref[...]
        # Cast BEFORE tanh: bf16 activations halve EUP vreg traffic (v6e/v7x).
        return jnp.tanh(z.astype(act_dtype))

    h = layer(w0_ref, b0_ref, xT)                     # [h0, TILE_B]
    h = layer(w1_ref, b1_ref, h)                      # [h1, TILE_B]
    m = layer(w2_ref, b2_ref, h)                      # [action_dim, TILE_B]

    meanT = m.astype(jnp.float32) * a_bound
    mean_ref[...] = meanT.T.astype(mean_ref.dtype)    # back to natural layout


# ---------------------------------------------------------------------------
# Wrapper: tiling decisions + pallas_call.  Weights are stored [in, out]
# (params layout) and transposed once here to the kernel's [out, in] layout
# (tiny, VMEM-resident across the whole grid).
# ---------------------------------------------------------------------------
def policy_forward(x, params, *, a_bound=1.0, tile_b=8192,
                   compute_dtype=jnp.float32, act_dtype=None,
                   expand_std=True):
    w0, b0, w1, b1, w2, b2, log_std = params
    batch, state_dim = x.shape
    h0 = w0.shape[1]
    h1 = w1.shape[1]
    action_dim = w2.shape[1]

    cdt = jnp.dtype(compute_dtype)
    adt = jnp.dtype(act_dtype) if act_dtype is not None else cdt

    # --- batch tiling (sublane axis, natural layout) -----------------------
    tile_b = max(8, _round_up(tile_b, 8))
    if batch >= 256:
        # v7x: guarantee >= 2 grid steps so both TensorCores get work.
        tile_b = min(tile_b, _round_up(pl.cdiv(batch, 2), 8))
    tile_b = min(tile_b, _round_up(batch, 8))
    grid = (pl.cdiv(batch, tile_b),)

    # Inputs: no transpose/pad in the wrapper; cast only if dtype differs
    # (callers wanting the bf16 bandwidth win should pass bf16 x directly).
    x_in = x if x.dtype == cdt else x.astype(cdt)
    w0t = w0.T.astype(cdt)
    w1t = w1.T.astype(cdt)
    w2t = w2.T.astype(cdt)
    b0c = b0.reshape(-1, 1).astype(jnp.float32)
    b1c = b1.reshape(-1, 1).astype(jnp.float32)
    b2c = b2.reshape(-1, 1).astype(jnp.float32)
    a_bound_arr = jnp.full((1,), a_bound, jnp.float32)

    # Full-array blocks with constant block index => params stay VMEM-resident
    # across the whole batch grid (no re-DMA per step).
    def _resident(shape):
        return pl.BlockSpec(shape, lambda i: (0, 0))

    flops = 2 * batch * (state_dim * h0 + h0 * h1 + h1 * action_dim)
    transcendentals = batch * (h0 + h1 + action_dim)
    bytes_accessed = (
        x_in.size * x_in.dtype.itemsize
        + batch * action_dim * 4
        + sum(int(a.size) * a.dtype.itemsize
              for a in (w0t, b0c, w1t, b1c, w2t, b2c)))

    action_mean = pl.pallas_call(
        functools.partial(_policy_kernel, act_dtype=adt),
        out_shape=jax.ShapeDtypeStruct((batch, action_dim), jnp.float32),
        grid=grid,
        in_specs=[
            pl.BlockSpec(memory_space=pltpu.MemorySpace.SMEM),      # a_bound
            pl.BlockSpec((tile_b, state_dim), lambda i: (i, 0)),    # x tile
            _resident((h0, state_dim)), _resident((h0, 1)),         # W0, b0
            _resident((h1, h0)),        _resident((h1, 1)),         # W1, b1
            _resident((action_dim, h1)), _resident((action_dim, 1)),  # W2, b2
        ],
        out_specs=pl.BlockSpec((tile_b, action_dim), lambda i: (i, 0)),
        compiler_params=pltpu.CompilerParams(
            dimension_semantics=("parallel",)),
        cost_estimate=pl.CostEstimate(
            flops=flops, transcendentals=transcendentals,
            bytes_accessed=bytes_accessed),
    )(a_bound_arr, x_in, w0t, b0c, w1t, b1c, w2t, b2c)

    # action_log_std / action_std are batch-invariant broadcasts of a tiny
    # (1, action_dim) parameter: keep them out of the kernel.  With
    # expand_std=False the dense-broadcast HBM writes are skipped too.
    log_std_row = log_std.astype(jnp.float32).reshape(1, action_dim)
    if expand_std:
        action_log_std = jnp.broadcast_to(log_std_row, (batch, action_dim))
        action_std = jnp.broadcast_to(jnp.exp(log_std_row),
                                      (batch, action_dim))
    else:
        action_log_std = log_std_row
        action_std = jnp.exp(log_std_row)
    return action_mean, action_log_std, action_std


# ---------------------------------------------------------------------------
# Parameter init mimicking nn.Linear defaults + the module's tweaks.
# Weights are stored [in_dim, out_dim].
# ---------------------------------------------------------------------------
def init_policy_params(key, state_dim, action_dim, hidden_size=(32, 32),
                       log_std=0.0):
    params = []
    dims = [state_dim] + list(hidden_size)
    keys = jax.random.split(key, len(hidden_size) + 1)
    for i, (din, dout) in enumerate(zip(dims[:-1], dims[1:])):
        bound = 1.0 / math.sqrt(din)
        kw, kb = jax.random.split(keys[i])
        w = jax.random.uniform(kw, (din, dout), jnp.float32, -bound, bound)
        b = jax.random.uniform(kb, (1, dout), jnp.float32, -bound, bound)
        params += [w, b]
    # action_mean head: weight *= 0.1, bias *= 0.0
    din, dout = dims[-1], action_dim
    bound = 1.0 / math.sqrt(din)
    kw, _ = jax.random.split(keys[-1])
    w = jax.random.uniform(kw, (din, dout), jnp.float32, -bound, bound) * 0.1
    b = jnp.zeros((1, dout), jnp.float32)
    params += [w, b]
    # action_log_std parameter, shape (1, action_dim)
    params.append(jnp.full((1, action_dim), log_std, jnp.float32))
    return tuple(params)


def policy_forward_ref(x, params, *, a_bound=1.0):
    """Pure-JAX reference for correctness checking."""
    w0, b0, w1, b1, w2, b2, log_std = params
    h = jnp.tanh(x @ w0 + b0)
    h = jnp.tanh(h @ w1 + b1)
    mean = jnp.tanh(h @ w2 + b2) * a_bound
    ls = jnp.broadcast_to(log_std, mean.shape)
    return mean, ls, jnp.exp(ls)


if __name__ == "__main__":
    key = jax.random.PRNGKey(0)
    k_x, k_p, k_x2 = jax.random.split(key, 3)

    state_dim, action_dim = 16, 8
    hidden_size = (32, 32)
    a_bound = 1.0
    params = init_policy_params(k_p, state_dim, action_dim, hidden_size,
                                log_std=0.0)

    # --- small batch (single grid step, block == full array) ---------------
    x_small = jax.random.normal(k_x, (8, state_dim), jnp.float32)
    out_small = jax.block_until_ready(
        policy_forward(x_small, params, a_bound=a_bound))
    ref_small = policy_forward_ref(x_small, params, a_bound=a_bound)
    for o, r in zip(out_small, ref_small):
        assert o.shape == r.shape
        assert jnp.allclose(o, r, atol=1e-5, rtol=1e-5)

    # --- larger, non-multiple batch: auto tile (>=2 steps, ragged last) ----
    x_big = jax.random.normal(k_x2, (300, state_dim), jnp.float32)
    out_big = jax.block_until_ready(
        policy_forward(x_big, params, a_bound=a_bound))
    ref_big = policy_forward_ref(x_big, params, a_bound=a_bound)
    for o, r in zip(out_big, ref_big):
        assert o.shape == r.shape
        assert jnp.allclose(o, r, atol=1e-5, rtol=1e-5)

    # --- explicit small tile: 3 grid steps, ragged last block of 44 rows ---
    out_t128 = jax.block_until_ready(
        policy_forward(x_big, params, a_bound=a_bound, tile_b=128))
    for o, r in zip(out_t128, ref_big):
        assert o.shape == r.shape
        assert jnp.allclose(o, r, atol=1e-5, rtol=1e-5)

    # --- bf16 inputs/weights + bf16 tanh (v6e/v7x path), f32 accumulation --
    out_bf16 = jax.block_until_ready(
        policy_forward(x_big, params, a_bound=a_bound, tile_b=128,
                       compute_dtype=jnp.bfloat16))
    assert jnp.allclose(out_bf16[0], ref_big[0], atol=5e-2, rtol=5e-2)

    # --- bf16 inputs/weights with f32 tanh (v5e-style config) --------------
    out_v5e = jax.block_until_ready(
        policy_forward(x_big, params, a_bound=a_bound, tile_b=128,
                       compute_dtype=jnp.bfloat16, act_dtype=jnp.float32))
    assert jnp.allclose(out_v5e[0], ref_big[0], atol=5e-2, rtol=5e-2)

    # --- compact log_std / std (no dense broadcast writes) -----------------
    mean_c, ls_c, std_c = jax.block_until_ready(
        policy_forward(x_big, params, a_bound=a_bound, expand_std=False))
    assert ls_c.shape == (1, action_dim) and std_c.shape == (1, action_dim)
    assert jnp.allclose(mean_c, ref_big[0], atol=1e-5, rtol=1e-5)

    print("KERNEL_OK")
</pallas_src>

<mosaic_0001>
module attributes {stable_mosaic.version = 11 : i64} {
  func.func @_policy_kernel(%arg0: i32, %arg1: memref<1xf32, #tpu.memory_space<smem>>, %arg2: memref<8x16xf32, #tpu.memory_space<vmem>>, %arg3: memref<32x16xf32, #tpu.memory_space<vmem>>, %arg4: memref<32x1xf32, #tpu.memory_space<vmem>>, %arg5: memref<32x32xf32, #tpu.memory_space<vmem>>, %arg6: memref<32x1xf32, #tpu.memory_space<vmem>>, %arg7: memref<8x32xf32, #tpu.memory_space<vmem>>, %arg8: memref<8x1xf32, #tpu.memory_space<vmem>>, %arg9: memref<8x8xf32, #tpu.memory_space<vmem>>) attributes {dimension_semantics = [#tpu.dimension_semantics<parallel>], iteration_bounds = array<i64: 1>, scalar_prefetch = 0 : i64, scratch_operands = 0 : i64, tpu.core_type = #tpu.core_type<tc>, window_params = [{transform_indices = @transform_0, window_bounds = array<i64: 1>}, {transform_indices = @transform_1, window_bounds = array<i64: 8, 16>}, {pipeline_mode = #tpu.pipeline_mode<synchronous>, transform_indices = @transform_2, window_bounds = array<i64: 32, 16>}, {pipeline_mode = #tpu.pipeline_mode<synchronous>, transform_indices = @transform_3, window_bounds = array<i64: 32, 1>}, {pipeline_mode = #tpu.pipeline_mode<synchronous>, transform_indices = @transform_4, window_bounds = array<i64: 32, 32>}, {pipeline_mode = #tpu.pipeline_mode<synchronous>, transform_indices = @transform_5, window_bounds = array<i64: 32, 1>}, {pipeline_mode = #tpu.pipeline_mode<synchronous>, transform_indices = @transform_6, window_bounds = array<i64: 8, 32>}, {pipeline_mode = #tpu.pipeline_mode<synchronous>, transform_indices = @transform_7, window_bounds = array<i64: 8, 1>}, {transform_indices = @transform_8, window_bounds = array<i64: 8, 8>}]} {
    %c0 = arith.constant 0 : index
    %0 = memref.load %arg1[%c0] : memref<1xf32, #tpu.memory_space<smem>>
    %c0_0 = arith.constant 0 : index
    %c0_1 = arith.constant 0 : index
    %1 = vector.load %arg2[%c0_0, %c0_1] : memref<8x16xf32, #tpu.memory_space<vmem>>, vector<8x16xf32>
    %2 = tpu.transpose %1, [1, 0] : vector<8x16xf32> -> vector<16x8xf32>
    %c0_2 = arith.constant 0 : index
    %c0_3 = arith.constant 0 : index
    %3 = vector.load %arg3[%c0_2, %c0_3] : memref<32x16xf32, #tpu.memory_space<vmem>>, vector<32x16xf32>
    %cst = arith.constant dense<0.000000e+00> : vector<32x8xf32>
    %4 = tpu.matmul %3, %2, %cst {dimension_numbers = #tpu.dot_dimension_numbers<[1], [0], [0], [1], [0, 0, 1, 1], [], []>} : vector<32x16xf32>, vector<16x8xf32>, vector<32x8xf32> -> vector<32x8xf32>
    %c0_4 = arith.constant 0 : index
    %c0_5 = arith.constant 0 : index
    %5 = vector.load %arg4[%c0_4, %c0_5] : memref<32x1xf32, #tpu.memory_space<vmem>>, vector<32x1xf32>
    %6 = vector.broadcast %5 : vector<32x1xf32> to vector<32x8xf32>
    %7 = arith.addf %4, %6 : vector<32x8xf32>
    %8 = math.tanh %7 : vector<32x8xf32>
    %c0_6 = arith.constant 0 : index
    %c0_7 = arith.constant 0 : index
    %9 = vector.load %arg5[%c0_6, %c0_7] : memref<32x32xf32, #tpu.memory_space<vmem>>, vector<32x32xf32>
    %cst_8 = arith.constant dense<0.000000e+00> : vector<32x8xf32>
    %10 = tpu.matmul %9, %8, %cst_8 {dimension_numbers = #tpu.dot_dimension_numbers<[1], [0], [0], [1], [0, 0, 1, 1], [], []>} : vector<32x32xf32>, vector<32x8xf32>, vector<32x8xf32> -> vector<32x8xf32>
    %c0_9 = arith.constant 0 : index
    %c0_10 = arith.constant 0 : index
    %11 = vector.load %arg6[%c0_9, %c0_10] : memref<32x1xf32, #tpu.memory_space<vmem>>, vector<32x1xf32>
    %12 = vector.broadcast %11 : vector<32x1xf32> to vector<32x8xf32>
    %13 = arith.addf %10, %12 : vector<32x8xf32>
    %14 = math.tanh %13 : vector<32x8xf32>
    %c0_11 = arith.constant 0 : index
    %c0_12 = arith.constant 0 : index
    %15 = vector.load %arg7[%c0_11, %c0_12] : memref<8x32xf32, #tpu.memory_space<vmem>>, vector<8x32xf32>
    %cst_13 = arith.constant dense<0.000000e+00> : vector<8x8xf32>
    %16 = tpu.matmul %15, %14, %cst_13 {dimension_numbers = #tpu.dot_dimension_numbers<[1], [0], [0], [1], [0, 0, 1, 1], [], []>} : vector<8x32xf32>, vector<32x8xf32>, vector<8x8xf32> -> vector<8x8xf32>
    %c0_14 = arith.constant 0 : index
    %c0_15 = arith.constant 0 : index
    %17 = vector.load %arg8[%c0_14, %c0_15] : memref<8x1xf32, #tpu.memory_space<vmem>>, vector<8x1xf32>
    %18 = vector.broadcast %17 : vector<8x1xf32> to vector<8x8xf32>
    %19 = arith.addf %16, %18 : vector<8x8xf32>
    %20 = math.tanh %19 : vector<8x8xf32>
    %21 = vector.broadcast %0 : f32 to vector<8x8xf32>
    %22 = arith.mulf %20, %21 : vector<8x8xf32>
    %23 = tpu.transpose %22, [1, 0] : vector<8x8xf32> -> vector<8x8xf32>
    %c0_16 = arith.constant 0 : index
    %c0_17 = arith.constant 0 : index
    %24 = vector.load %arg9[%c0_16, %c0_17] : memref<8x8xf32, #tpu.memory_space<vmem>>, vector<8x8xf32>
    tpu.vector_store %arg9[%c0_16, %c0_17], %23 {strides = array<i32>} : memref<8x8xf32, #tpu.memory_space<vmem>>, vector<8x8xf32>,
    return
  }
  func.func @transform_0(%arg0: i32) -> i32 {
    %c0_i32 = arith.constant 0 : i32
    %c0_i32_0 = arith.constant 0 : i32
    return %c0_i32 : i32
  }
  func.func @transform_1(%arg0: i32) -> (i32, i32) {
    %c0_i32 = arith.constant 0 : i32
    %c0_i32_0 = arith.constant 0 : i32
    return %arg0, %c0_i32 : i32, i32
  }
  func.func @transform_2(%arg0: i32) -> (i32, i32) {
    %c0_i32 = arith.constant 0 : i32
    %c0_i32_0 = arith.constant 0 : i32
    %c0_i32_1 = arith.constant 0 : i32
    return %c0_i32, %c0_i32_0 : i32, i32
  }
  func.func @transform_3(%arg0: i32) -> (i32, i32) {
    %c0_i32 = arith.constant 0 : i32
    %c0_i32_0 = arith.constant 0 : i32
    %c0_i32_1 = arith.constant 0 : i32
    return %c0_i32, %c0_i32_0 : i32, i32
  }
  func.func @transform_4(%arg0: i32) -> (i32, i32) {
    %c0_i32 = arith.constant 0 : i32
    %c0_i32_0 = arith.constant 0 : i32
    %c0_i32_1 = arith.constant 0 : i32
    return %c0_i32, %c0_i32_0 : i32, i32
  }
  func.func @transform_5(%arg0: i32) -> (i32, i32) {
    %c0_i32 = arith.constant 0 : i32
    %c0_i32_0 = arith.constant 0 : i32
    %c0_i32_1 = arith.constant 0 : i32
    return %c0_i32, %c0_i32_0 : i32, i32
  }
  func.func @transform_6(%arg0: i32) -> (i32, i32) {
    %c0_i32 = arith.constant 0 : i32
    %c0_i32_0 = arith.constant 0 : i32
    %c0_i32_1 = arith.constant 0 : i32
    return %c0_i32, %c0_i32_0 : i32, i32
  }
  func.func @transform_7(%arg0: i32) -> (i32, i32) {
    %c0_i32 = arith.constant 0 : i32
    %c0_i32_0 = arith.constant 0 : i32
    %c0_i32_1 = arith.constant 0 : i32
    return %c0_i32, %c0_i32_0 : i32, i32
  }
  func.func @transform_8(%arg0: i32) -> (i32, i32) {
    %c0_i32 = arith.constant 0 : i32
    %c0_i32_0 = arith.constant 0 : i32
    return %arg0, %c0_i32 : i32, i32
  }
}

</mosaic_0001>

<llo_original>
// kernel: tpu_custom_call.1
$region0: #{tpu_custom_call.1}
  #allocation0 [shape = 'u32[]', space=smem, size = 0x4, offset = 0x4, fixed_abs, tag = 'smem constant byte address 0x4 - core index']
  #allocation1 [shape = 'u32[72,128]{1,0:T(1,128)}', space=vmem, size = 0x9000, scoped, tag = 'internal scratch']
  #allocation2 [shape = 'f32[1]{0:T(128)S(6)}', space=smem, size = 0x200, scoped, tag = 'scoped memory for tpu_custom_call.1']
  %s0 = inlined_call_operand.<no memory space> [shape: f32[1], index: 0, kind: input, shape index: {}]
  %s1 = inlined_call_operand.vmem [shape: f32[8,16], index: 1, kind: input, shape index: {}]
  %s2 = inlined_call_operand.vmem [shape: f32[32,16], index: 2, kind: input, shape index: {}]
  %s3 = inlined_call_operand.vmem [shape: f32[32,1], index: 3, kind: input, shape index: {}]
  %s4 = inlined_call_operand.vmem [shape: f32[32,32], index: 4, kind: input, shape index: {}]
  %s5 = inlined_call_operand.vmem [shape: f32[32,1], index: 5, kind: input, shape index: {}]
  %s6 = inlined_call_operand.vmem [shape: f32[8,32], index: 6, kind: input, shape index: {}]
  %s7 = inlined_call_operand.vmem [shape: f32[8,1], index: 7, kind: input, shape index: {}]
  %s8 = inlined_call_operand.hbm [shape: f32[8,8], index: 8, kind: output, shape index: {}]
  %s9 = sld [smem:[#allocation0]]
  $region42: #{tpu_custom_call.1} parent=0
    _
  %s11 = ssub.s32 1, %s9
  %s12 = scalar_select 0, %s11, %s9
  %13 = sst [smem:[#allocation2]] %s0
  $region1: #{tpu_custom_call.1} parent=0
    #allocation3 [shape = 'u8[4096]{0}', space=vmem, size = 0x1000, scoped, tag = 'output window, operand 0, single buffered']
    #allocation4 [shape = 's32[1]{0}', space=sflag, size = 0x4, scoped, tag = 'scoped memory for tpu_custom_call.1']
    %14 = vsyncpa [#allocation4], 0
    // Predicated region
    $region2: #{tpu_custom_call.1} parent=1 // pred_check
      _
    $region3: #{tpu_custom_call.1} parent=1 // pred_check_branch
      %16 = sbr.rel (0) target = $region5
    $region4: #{tpu_custom_call.1} parent=1 // pred_region
      _
    $region5: #{tpu_custom_call.1} parent=1 // pred_fallthru
      _
    // Predicated region
    $region6: #{tpu_custom_call.1} parent=1 // pred_check
      _
    $region7: #{tpu_custom_call.1} parent=1 // pred_check_branch
      %18 = sbr.rel (0) target = $region9
    $region8: #{tpu_custom_call.1} parent=1 // pred_region
      _
    $region9: #{tpu_custom_call.1} parent=1 // pred_fallthru
      _
    // Predicated region
    $region10: #{tpu_custom_call.1} parent=1 // pred_check
      _
    $region11: #{tpu_custom_call.1} parent=1 // pred_check_branch
      %20 = sbr.rel (0) target = $region13
    $region12: #{tpu_custom_call.1} parent=1 // pred_region
      _
    $region13: #{tpu_custom_call.1} parent=1 // pred_fallthru
      _
    // Predicated region
    $region14: #{tpu_custom_call.1} parent=1 // pred_check
      _
    $region15: #{tpu_custom_call.1} parent=1 // pred_check_branch
      %22 = sbr.rel (0) target = $region17
    $region16: #{tpu_custom_call.1} parent=1 // pred_region
      _
    $region17: #{tpu_custom_call.1} parent=1 // pred_fallthru
      _
    // Predicated region
    $region18: #{tpu_custom_call.1} parent=1 // pred_check
      _
    $region19: #{tpu_custom_call.1} parent=1 // pred_check_branch
      %24 = sbr.rel (0) target = $region21
    $region20: #{tpu_custom_call.1} parent=1 // pred_region
      _
    $region21: #{tpu_custom_call.1} parent=1 // pred_fallthru
      _
    // Predicated region
    $region22: #{tpu_custom_call.1} parent=1 // pred_check
      _
    $region23: #{tpu_custom_call.1} parent=1 // pred_check_branch
      %26 = sbr.rel (0) target = $region25
    $region24: #{tpu_custom_call.1} parent=1 // pred_region
      _
    $region25: #{tpu_custom_call.1} parent=1 // pred_fallthru
      _
    // Predicated region
    $region26: #{tpu_custom_call.1} parent=1 // pred_check
      _
    $region27: #{tpu_custom_call.1} parent=1 // pred_check_branch
      %28 = sbr.rel (0) target = $region29
    $region28: #{tpu_custom_call.1} parent=1 // pred_region
      _
    $region29: #{tpu_custom_call.1} parent=1 // pred_fallthru
      _
    // Predicated region
    $region30: #{tpu_custom_call.1} parent=1 // pred_check
      _
    $region31: #{tpu_custom_call.1} parent=1 // pred_check_branch
      %30 = sbr.rel (0) target = $region33
    $region32: #{tpu_custom_call.1} parent=1 // pred_region
      _
    $region33: #{tpu_custom_call.1} parent=1 // pred_fallthru
      _
    %s31 = sld [smem:[#allocation2]]
    %v32 = vld [vmem:[%s1] sm:$0xff]
    %v33 = vld [vmem:[%s2] sm:$0xff]
    %v34 = vld [vmem:[%s2 + $0x8] sm:$0xff]
    %v35 = vld [vmem:[%s2 + $0x10] sm:$0xff]
    %v36 = vld [vmem:[%s2 + $0x18] sm:$0xff]
    %v37 = vld [vmem:[%s3] sm:$0xff]
    %v38 = vld [vmem:[%s3 + $0x8] sm:$0xff]
    %v39 = vld [vmem:[%s3 + $0x10] sm:$0xff]
    %v40 = vld [vmem:[%s3 + $0x18] sm:$0xff]
    %42 = vset.pattern.permute.xlu0 0
    %43 = vperm.xlu0 %42, %v37
    %v44 = vpop.permute.xlu0 %43
    %47 = vset.pattern.permute.xlu0 0
    %48 = vperm.xlu0 %47, %v38
    %v49 = vpop.permute.xlu0 %48
    %52 = vset.pattern.permute.xlu0 0
    %53 = vperm.xlu0 %52, %v39
    %v54 = vpop.permute.xlu0 %53
    %57 = vset.pattern.permute.xlu0 0
    %58 = vperm.xlu0 %57, %v40
    %v59 = vpop.permute.xlu0 %58
    %vm61 = vcmask 130048
    %v63 = vsel %vm61, %v33, 0
    %v66 = vsel %vm61, %v34, 0
    %v69 = vsel %vm61, %v35, 0
    %v72 = vsel %vm61, %v36, 0
    %v75 = vsel %vm61, %v32, 0
    %77 = vmatpush.xpose.msra.mxu0 0.0
    %78 = vmatpush.xpose.msra.mxu0 0.0
    %79 = vmatpush.xpose.msra.mxu0 0.0
    %80 = vmatpush.xpose.msra.mxu0 0.0
    %81 = vmatpush.xpose.msra.mxu0 0.0
    %82 = vmatpush.xpose.msra.mxu0 0.0
    %83 = vmatpush.xpose.msra.mxu0 0.0
    %84 = vmatpush.xpose.msra.mxu0 0.0
    %85 = vmatpush.xpose.msra.mxu0 0.0
    %86 = vmatpush.xpose.msra.mxu0 0.0
    %87 = vmatpush.xpose.msra.mxu0 0.0
    %88 = vmatpush.xpose.msra.mxu0 0.0
    %89 = vmatpush.xpose.msra.mxu0 0.0
    %90 = vmatpush.xpose.msra.mxu0 0.0
    %91 = vmatpush.xpose.msra.mxu0 0.0
    %92 = vmatpush.xpose.msra.mxu0 %v75
    %93 = vmatmul.f32.gmra.mxu0 %v63
    %v94 = vpop.f32.mrf.mxu0
    %v95 = vadd.f32 %v44, %v94
    %96 = vmatmul.f32.gmra.mxu0 %v66
    %v97 = vpop.f32.mrf.mxu0
    %v98 = vadd.f32 %v49, %v97
    %99 = vmatmul.f32.gmra.mxu0 %v69
    %v100 = vpop.f32.mrf.mxu0
    %v101 = vadd.f32 %v54, %v100
    %102 = vmatmul.f32.gmra.mxu0 %v72
    %v103 = vpop.f32.mrf.mxu0
    %v104 = vadd.f32 %v59, %v103
    %105 = vdwg.mxu0
    %v106 = vtanh.pop %v95
    %v107 = vtanh.pop %v98
    %v108 = vtanh.pop %v101
    %v109 = vtanh.pop %v104
    %v110 = vld [vmem:[%s4] sm:$0xff]
    %v111 = vld [vmem:[%s4 + $0x8] sm:$0xff]
    %v112 = vld [vmem:[%s4 + $0x10] sm:$0xff]
    %v113 = vld [vmem:[%s4 + $0x18] sm:$0xff]
    %v114 = vld [vmem:[%s5] sm:$0xff]
    %v115 = vld [vmem:[%s5 + $0x8] sm:$0xff]
    %v116 = vld [vmem:[%s5 + $0x10] sm:$0xff]
    %v117 = vld [vmem:[%s5 + $0x18] sm:$0xff]
    %119 = vset.pattern.permute.xlu0 0
    %120 = vperm.xlu0 %119, %v114
    %v121 = vpop.permute.xlu0 %120
    %124 = vset.pattern.permute.xlu0 0
    %125 = vperm.xlu0 %124, %v115
    %v126 = vpop.permute.xlu0 %125
    %129 = vset.pattern.permute.xlu0 0
    %130 = vperm.xlu0 %129, %v116
    %v131 = vpop.permute.xlu0 %130
    %134 = vset.pattern.permute.xlu0 0
    %135 = vperm.xlu0 %134, %v117
    %v136 = vpop.permute.xlu0 %135
    %vm138 = vcmask 261120
    %v140 = vsel %vm138, %v110, 0
    %v143 = vsel %vm138, %v111, 0
    %v146 = vsel %vm138, %v112, 0
    %v149 = vsel %vm138, %v113, 0
    %151 = vmatpush.msra.mxu0 0.0
    %152 = vmatpush.msra.mxu0 0.0
    %153 = vmatpush.msra.mxu0 0.0
    %154 = vmatpush.msra.mxu0 0.0
    %155 = vmatpush.msra.mxu0 0.0
    %156 = vmatpush.msra.mxu0 0.0
    %157 = vmatpush.msra.mxu0 0.0
    %158 = vmatpush.msra.mxu0 0.0
    %159 = vmatpush.msra.mxu0 0.0
    %160 = vmatpush.msra.mxu0 0.0
    %161 = vmatpush.msra.mxu0 0.0
    %162 = vmatpush.msra.mxu0 0.0
    %163 = vmatpush.msra.mxu0 %v109
    %164 = vmatpush.msra.mxu0 %v108
    %165 = vmatpush.msra.mxu0 %v107
    %166 = vmatpush.msra.mxu0 %v106
    %167 = vmatmul.f32.gmra.mxu0 %v140
    %v168 = vpop.f32.mrf.mxu0
    %v169 = vadd.f32 %v121, %v168
    %170 = vmatmul.f32.gmra.mxu0 %v143
    %v171 = vpop.f32.mrf.mxu0
    %v172 = vadd.f32 %v126, %v171
    %173 = vmatmul.f32.gmra.mxu0 %v146
    %v174 = vpop.f32.mrf.mxu0
    %v175 = vadd.f32 %v131, %v174
    %176 = vmatmul.f32.gmra.mxu0 %v149
    %v177 = vpop.f32.mrf.mxu0
    %v178 = vadd.f32 %v136, %v177
    %179 = vdwg.mxu0
    %v180 = vtanh.pop %v169
    %v181 = vtanh.pop %v172
    %v182 = vtanh.pop %v175
    %v183 = vtanh.pop %v178
    %v184 = vld [vmem:[%s6] sm:$0xff]
    %v185 = vld [vmem:[%s7] sm:$0xff]
    %187 = vset.pattern.permute.xlu0 0
    %188 = vperm.xlu0 %187, %v185
    %v189 = vpop.permute.xlu0 %188
    %v192 = vsel %vm138, %v184, 0
    %194 = vmatpush.msra.mxu0 0.0
    %195 = vmatpush.msra.mxu0 0.0
    %196 = vmatpush.msra.mxu0 0.0
    %197 = vmatpush.msra.mxu0 0.0
    %198 = vmatpush.msra.mxu0 0.0
    %199 = vmatpush.msra.mxu0 0.0
    %200 = vmatpush.msra.mxu0 0.0
    %201 = vmatpush.msra.mxu0 0.0
    %202 = vmatpush.msra.mxu0 0.0
    %203 = vmatpush.msra.mxu0 0.0
    %204 = vmatpush.msra.mxu0 0.0
    %205 = vmatpush.msra.mxu0 0.0
    %206 = vmatpush.msra.mxu0 %v183
    %207 = vmatpush.msra.mxu0 %v182
    %208 = vmatpush.msra.mxu0 %v181
    %209 = vmatpush.msra.mxu0 %v180
    %210 = vmatmul.f32.gmra.mxu0 %v192
    %v211 = vpop.f32.mrf.mxu0
    %v212 = vadd.f32 %v189, %v211
    %213 = vdwg.mxu0
    %v214 = vtanh.pop %v212
    %v215 = vstv %s31
    %v216 = vmul.f32 %v214, %v215
    %217 = vxpose.xlu0.b32.start [1/16] %v216, 128
    %218 = vxpose.xlu0.b32.cont [2/16] 0.0, 128
    %219 = vxpose.xlu0.b32.cont [3/16] 0.0, 128
    %220 = vxpose.xlu0.b32.cont [4/16] 0.0, 128
    %221 = vxpose.xlu0.b32.cont [5/16] 0.0, 128
    %222 = vxpose.xlu0.b32.cont [6/16] 0.0, 128
    %223 = vxpose.xlu0.b32.cont [7/16] 0.0, 128
    %224 = vxpose.xlu0.b32.cont [8/16] 0.0, 128
    %225 = vxpose.xlu0.b32.cont [9/16] 0.0, 128
    %226 = vxpose.xlu0.b32.cont [10/16] 0.0, 128
    %227 = vxpose.xlu0.b32.cont [11/16] 0.0, 128
    %228 = vxpose.xlu0.b32.cont [12/16] 0.0, 128
    %229 = vxpose.xlu0.b32.cont [13/16] 0.0, 128
    %230 = vxpose.xlu0.b32.cont [14/16] 0.0, 128
    %231 = vxpose.xlu0.b32.cont [15/16] 0.0, 128
    %232 = vxpose.xlu0.b32.end [16/16] 0.0, 128
    %v233 = vpop.trf.xlu0
    %v234 = vpop.trf.xlu0
    %v235 = vpop.trf.xlu0
    %v236 = vpop.trf.xlu0
    %v237 = vpop.trf.xlu0
    %v238 = vpop.trf.xlu0
    %v239 = vpop.trf.xlu0
    %v240 = vpop.trf.xlu0
    %v241 = vpop.trf.xlu0
    %v242 = vpop.trf.xlu0
    %v243 = vpop.trf.xlu0
    %v244 = vpop.trf.xlu0
    %v245 = vpop.trf.xlu0
    %v246 = vpop.trf.xlu0
    %v247 = vpop.trf.xlu0
    %v248 = vpop.trf.xlu0
    %vm249 = vcmask 64512
    %250 = vst.msk [vmem:[#allocation3] sm:$0xff] %vm249, %v233
    // Predicated region
    $region34: #{tpu_custom_call.1} parent=1 // pred_check
      _
    $region35: #{tpu_custom_call.1} parent=1 // pred_check_branch
      %252 = sbr.rel (0) target = $region37
    $region36: #{tpu_custom_call.1} parent=1 // pred_region
      %254 = vsyncadd [#allocation4], 0
      %s256 = sshll.u32 [#allocation3], 4
      %s257 = int_to_ptr.vmem [resolvable:$true] %s256
      %s258 = sshll.u32 %s8, 4
      %s259 = int_to_ptr.hbm [resolvable:$true] %s258
      %261 = dma.vmem_to_hbm [thread:$0]  %s257, 128, %s259, [#allocation4]
    $region37: #{tpu_custom_call.1} parent=1 // pred_fallthru
      _
    // Predicated region
    $region38: #{tpu_custom_call.1} parent=1 // pred_check
      _
    $region39: #{tpu_custom_call.1} parent=1 // pred_check_branch
      %263 = sbr.rel (0) target = $region41
    $region40: #{tpu_custom_call.1} parent=1 // pred_region
      %265 = dma.done [#allocation4], 128
    $region41: #{tpu_custom_call.1} parent=1 // pred_fallthru
      _
    %266 = vsyncpa [#allocation4], 1

</llo_original>
